<compile_context>
chip_gen: v6e
topology: v6e:2x2x1
jax: 0.10.0
libtpu: 0.0.40
codegen_flags: <defaults>
</compile_context>

<pallas_src>
import functools

import jax
import jax.numpy as jnp
from jax.experimental import pallas as pl
from jax.experimental.pallas import tpu as pltpu

H1, H2 = 128, 64          # hidden sizes from the PyTorch module
LANE = 128                # TPU lane width: padded fc3 output width
SUB = 8                   # sublane multiple


def _round_up(n, m):
    return ((n + m - 1) // m) * m


def qnet_kernel(x_ref, w1_ref, b1_ref, w2_ref, b2_ref, w3_ref, b3_ref,
                logits_ref, action_ref, *, out_dim):
    # Three MXU matmuls (bf16 in, f32 accumulate) + f32 bias/ReLU epilogues on the VPU.
    x = x_ref[...]                                                # (TB, K_pad) bf16
    h1 = jnp.dot(x, w1_ref[...], preferred_element_type=jnp.float32) + b1_ref[...]
    h1 = jnp.maximum(h1, 0.0).astype(x.dtype)
    h2 = jnp.dot(h1, w2_ref[...], preferred_element_type=jnp.float32) + b2_ref[...]
    h2 = jnp.maximum(h2, 0.0).astype(x.dtype)
    logits = jnp.dot(h2, w3_ref[...], preferred_element_type=jnp.float32) + b3_ref[...]

    # Lane-dense (TB, 128) store -> unmasked vst.
    logits_ref[...] = logits.astype(logits_ref.dtype)

    # Fused greedy argmax over the valid columns only (padded columns masked out).
    col = jax.lax.broadcasted_iota(jnp.int32, logits.shape, 1)
    neg = jnp.finfo(jnp.float32).min
    masked = jnp.where(col < out_dim, logits, neg)
    row_max = jnp.max(masked, axis=1, keepdims=True)
    # first-occurrence argmax via min-of-index (all f32 VPU/XLU ops)
    idx = jnp.where(masked == row_max, col.astype(jnp.float32), float(LANE))
    action_ref[...] = jnp.min(idx, axis=1, keepdims=True).astype(jnp.int32)


@functools.partial(jax.jit, static_argnames=("out_dim", "max_tile"))
def qnet_forward(x, params, out_dim, max_tile=256):
    """x: (B, input_layer) float32. Returns (logits (B, out_dim) f32, actions (B,) i32)."""
    w1, b1 = params["w1"], params["b1"]
    w2, b2 = params["w2"], params["b2"]
    w3, b3 = params["w3"], params["b3"]

    B, in_dim = x.shape
    k_pad = w1.shape[0]                                  # fc1 K, already padded to 8

    # Batch tile: keep M at an MXU-friendly size, bound live ranges, allow x/out
    # DMA double-buffering; weights stay resident (constant index_map).
    tb = min(max_tile, _round_up(B, SUB))
    b_pad = _round_up(B, tb)
    n_tiles = b_pad // tb

    x_p = jnp.zeros((b_pad, k_pad), jnp.bfloat16).at[:B, :in_dim].set(x.astype(jnp.bfloat16))

    kernel = functools.partial(qnet_kernel, out_dim=out_dim)
    logits_pad, actions = pl.pallas_call(
        kernel,
        out_shape=(
            jax.ShapeDtypeStruct((b_pad, LANE), jnp.float32),
            jax.ShapeDtypeStruct((b_pad, 1), jnp.int32),
        ),
        grid=(n_tiles,),
        in_specs=[
            pl.BlockSpec((tb, k_pad), lambda i: (i, 0)),    # x tile
            pl.BlockSpec((k_pad, H1), lambda i: (0, 0)),    # w1 (resident)
            pl.BlockSpec((1, H1), lambda i: (0, 0)),        # b1
            pl.BlockSpec((H1, H2), lambda i: (0, 0)),       # w2
            pl.BlockSpec((1, H2), lambda i: (0, 0)),        # b2
            pl.BlockSpec((H2, LANE), lambda i: (0, 0)),     # w3 (N padded to 128)
            pl.BlockSpec((1, LANE), lambda i: (0, 0)),      # b3 (padded)
        ],
        out_specs=(
            pl.BlockSpec((tb, LANE), lambda i: (i, 0)),     # lane-dense logits
            pl.BlockSpec((tb, 1), lambda i: (i, 0)),        # fused greedy action
        ),
        compiler_params=pltpu.CompilerParams(dimension_semantics=("parallel",)),
    )(x_p, w1, b1, w2, b2, w3, b3)

    return logits_pad[:B, :out_dim], actions[:B, 0]


def init_qnet_params(key, input_layer, output_layer, dtype=jnp.bfloat16):
    """nn.Linear-style U(-1/sqrt(fan_in), 1/sqrt(fan_in)) init; padding done offline."""
    def linear_init(k, fan_in, fan_out):
        kw, kb = jax.random.split(k)
        bound = 1.0 / jnp.sqrt(jnp.float32(fan_in))
        w = jax.random.uniform(kw, (fan_in, fan_out), jnp.float32, -bound, bound)
        b = jax.random.uniform(kb, (fan_out,), jnp.float32, -bound, bound)
        return w, b

    k1, k2, k3 = jax.random.split(key, 3)
    w1, b1 = linear_init(k1, input_layer, H1)
    w2, b2 = linear_init(k2, H1, H2)
    w3, b3 = linear_init(k3, H2, output_layer)

    # Offline zero-padding: fc1 K -> multiple of 8 (sublane), fc3 N -> 128 (lane-dense).
    k_pad = max(SUB, _round_up(input_layer, SUB))
    w1_p = jnp.zeros((k_pad, H1), jnp.float32).at[:input_layer, :].set(w1)
    w3_p = jnp.zeros((H2, LANE), jnp.float32).at[:, :output_layer].set(w3)
    b3_p = jnp.zeros((LANE,), jnp.float32).at[:output_layer].set(b3)

    return {
        "w1": w1_p.astype(dtype), "b1": b1.reshape(1, H1).astype(jnp.float32),
        "w2": w2.astype(dtype),   "b2": b2.reshape(1, H2).astype(jnp.float32),
        "w3": w3_p.astype(dtype), "b3": b3_p.reshape(1, LANE).astype(jnp.float32),
    }


def qnet_reference(x, p, out_dim):
    """Pure-JAX reference replicating the kernel's bf16-in / f32-accumulate numerics."""
    in_dim = x.shape[1]
    xb = x.astype(p["w1"].dtype)
    h1 = jnp.maximum(
        jnp.dot(xb, p["w1"][:in_dim], preferred_element_type=jnp.float32) + p["b1"], 0.0
    ).astype(p["w2"].dtype)
    h2 = jnp.maximum(
        jnp.dot(h1, p["w2"], preferred_element_type=jnp.float32) + p["b2"], 0.0
    ).astype(p["w3"].dtype)
    logits = jnp.dot(h2, p["w3"], preferred_element_type=jnp.float32) + p["b3"]
    return logits[:, :out_dim]


if __name__ == "__main__":
    key = jax.random.PRNGKey(0)
    k_param, k_x = jax.random.split(key)

    input_layer = 4      # CartPole-like observation dim
    output_layer = 2     # action dim
    batch = 8

    params = init_qnet_params(k_param, input_layer, output_layer)
    x = jax.random.normal(k_x, (batch, input_layer), jnp.float32)

    logits, actions = qnet_forward(x, params, out_dim=output_layer)
    logits, actions = jax.block_until_ready((logits, actions))

    ref = qnet_reference(x, params, output_layer)
    assert logits.shape == (batch, output_layer)
    assert actions.shape == (batch,)
    assert jnp.allclose(logits, ref, atol=1e-3, rtol=1e-3), "logits mismatch vs reference"
    # fused argmax must agree with argmax of the returned logits
    assert jnp.array_equal(actions, jnp.argmax(logits, axis=1).astype(jnp.int32)), "action mismatch"

    # select_action equivalent: greedy action comes straight out of the kernel.
    # TODO(synk): epsilon-greedy exploration / replay buffer / optimizer are host-side RL glue,
    # not part of the forward pass, so they stay outside the kernel.
    _action = int(actions[0])

    print("KERNEL_OK")
</pallas_src>

<mosaic_0001>
module attributes {stable_mosaic.version = 11 : i64} {
  func.func @qnet_kernel(%arg0: i32, %arg1: memref<8x8xbf16, #tpu.memory_space<vmem>>, %arg2: memref<8x128xbf16, #tpu.memory_space<vmem>>, %arg3: memref<1x128xf32, #tpu.memory_space<vmem>>, %arg4: memref<128x64xbf16, #tpu.memory_space<vmem>>, %arg5: memref<1x64xf32, #tpu.memory_space<vmem>>, %arg6: memref<64x128xbf16, #tpu.memory_space<vmem>>, %arg7: memref<1x128xf32, #tpu.memory_space<vmem>>, %arg8: memref<8x128xf32, #tpu.memory_space<vmem>>, %arg9: memref<8x1xi32, #tpu.memory_space<vmem>>) attributes {dimension_semantics = [#tpu.dimension_semantics<parallel>], iteration_bounds = array<i64: 1>, scalar_prefetch = 0 : i64, scratch_operands = 0 : i64, tpu.core_type = #tpu.core_type<tc>, window_params = [{transform_indices = @transform_0, window_bounds = array<i64: 8, 8>}, {pipeline_mode = #tpu.pipeline_mode<synchronous>, transform_indices = @transform_1, window_bounds = array<i64: 8, 128>}, {pipeline_mode = #tpu.pipeline_mode<synchronous>, transform_indices = @transform_2, window_bounds = array<i64: 1, 128>}, {pipeline_mode = #tpu.pipeline_mode<synchronous>, transform_indices = @transform_3, window_bounds = array<i64: 128, 64>}, {pipeline_mode = #tpu.pipeline_mode<synchronous>, transform_indices = @transform_4, window_bounds = array<i64: 1, 64>}, {pipeline_mode = #tpu.pipeline_mode<synchronous>, transform_indices = @transform_5, window_bounds = array<i64: 64, 128>}, {pipeline_mode = #tpu.pipeline_mode<synchronous>, transform_indices = @transform_6, window_bounds = array<i64: 1, 128>}, {transform_indices = @transform_7, window_bounds = array<i64: 8, 128>}, {transform_indices = @transform_8, window_bounds = array<i64: 8, 1>}]} {
    %c0 = arith.constant 0 : index
    %c0_0 = arith.constant 0 : index
    %0 = vector.load %arg1[%c0, %c0_0] : memref<8x8xbf16, #tpu.memory_space<vmem>>, vector<8x8xbf16>
    %c0_1 = arith.constant 0 : index
    %c0_2 = arith.constant 0 : index
    %1 = vector.load %arg2[%c0_1, %c0_2] : memref<8x128xbf16, #tpu.memory_space<vmem>>, vector<8x128xbf16>
    %cst = arith.constant dense<0.000000e+00> : vector<8x128xf32>
    %2 = tpu.matmul %0, %1, %cst {dimension_numbers = #tpu.dot_dimension_numbers<[1], [0], [0], [1], [0, 0, 1, 1], [], []>} : vector<8x8xbf16>, vector<8x128xbf16>, vector<8x128xf32> -> vector<8x128xf32>
    %c0_3 = arith.constant 0 : index
    %c0_4 = arith.constant 0 : index
    %3 = vector.load %arg3[%c0_3, %c0_4] : memref<1x128xf32, #tpu.memory_space<vmem>>, vector<1x128xf32>
    %4 = vector.broadcast %3 : vector<1x128xf32> to vector<8x128xf32>
    %5 = arith.addf %2, %4 : vector<8x128xf32>
    %cst_5 = arith.constant 0.000000e+00 : f32
    %6 = vector.broadcast %cst_5 : f32 to vector<8x128xf32>
    %7 = arith.maximumf %5, %6 : vector<8x128xf32>
    %8 = arith.truncf %7 : vector<8x128xf32> to vector<8x128xbf16>
    %c0_6 = arith.constant 0 : index
    %c0_7 = arith.constant 0 : index
    %9 = vector.load %arg4[%c0_6, %c0_7] : memref<128x64xbf16, #tpu.memory_space<vmem>>, vector<128x64xbf16>
    %cst_8 = arith.constant dense<0.000000e+00> : vector<8x64xf32>
    %10 = tpu.matmul %8, %9, %cst_8 {dimension_numbers = #tpu.dot_dimension_numbers<[1], [0], [0], [1], [0, 0, 1, 1], [], []>} : vector<8x128xbf16>, vector<128x64xbf16>, vector<8x64xf32> -> vector<8x64xf32>
    %c0_9 = arith.constant 0 : index
    %c0_10 = arith.constant 0 : index
    %11 = vector.load %arg5[%c0_9, %c0_10] : memref<1x64xf32, #tpu.memory_space<vmem>>, vector<1x64xf32>
    %12 = vector.broadcast %11 : vector<1x64xf32> to vector<8x64xf32>
    %13 = arith.addf %10, %12 : vector<8x64xf32>
    %cst_11 = arith.constant 0.000000e+00 : f32
    %14 = vector.broadcast %cst_11 : f32 to vector<8x64xf32>
    %15 = arith.maximumf %13, %14 : vector<8x64xf32>
    %16 = arith.truncf %15 : vector<8x64xf32> to vector<8x64xbf16>
    %c0_12 = arith.constant 0 : index
    %c0_13 = arith.constant 0 : index
    %17 = vector.load %arg6[%c0_12, %c0_13] : memref<64x128xbf16, #tpu.memory_space<vmem>>, vector<64x128xbf16>
    %cst_14 = arith.constant dense<0.000000e+00> : vector<8x128xf32>
    %18 = tpu.matmul %16, %17, %cst_14 {dimension_numbers = #tpu.dot_dimension_numbers<[1], [0], [0], [1], [0, 0, 1, 1], [], []>} : vector<8x64xbf16>, vector<64x128xbf16>, vector<8x128xf32> -> vector<8x128xf32>
    %c0_15 = arith.constant 0 : index
    %c0_16 = arith.constant 0 : index
    %19 = vector.load %arg7[%c0_15, %c0_16] : memref<1x128xf32, #tpu.memory_space<vmem>>, vector<1x128xf32>
    %20 = vector.broadcast %19 : vector<1x128xf32> to vector<8x128xf32>
    %21 = arith.addf %18, %20 : vector<8x128xf32>
    %c0_17 = arith.constant 0 : index
    %c0_18 = arith.constant 0 : index
    %22 = vector.load %arg8[%c0_17, %c0_18] : memref<8x128xf32, #tpu.memory_space<vmem>>, vector<8x128xf32>
    tpu.vector_store %arg8[%c0_17, %c0_18], %21 {strides = array<i32>} : memref<8x128xf32, #tpu.memory_space<vmem>>, vector<8x128xf32>,
    %23 = tpu.iota {dimensions = array<i32: 1>} : vector<8x128xi32>
    %c2_i32 = arith.constant 2 : i32
    %24 = vector.broadcast %c2_i32 : i32 to vector<8x128xi32>
    %25 = arith.cmpi slt, %23, %24 : vector<8x128xi32>
    %cst_19 = arith.constant -3.40282347E+38 : f32
    %26 = vector.broadcast %cst_19 : f32 to vector<8x128xf32>
    %27 = arith.select %25, %21, %26 : vector<8x128xi1>, vector<8x128xf32>
    %cst_20 = arith.constant dense<0xFF800000> : vector<8xf32>
    %28 = vector.multi_reduction <maximumf>, %27, %cst_20 [1] : vector<8x128xf32> to vector<8xf32>
    %29 = vector.shape_cast %28 : vector<8xf32> to vector<8x1xf32>
    %30 = vector.broadcast %29 : vector<8x1xf32> to vector<8x128xf32>
    %31 = arith.cmpf oeq, %27, %30 : vector<8x128xf32>
    %32 = arith.sitofp %23 : vector<8x128xi32> to vector<8x128xf32>
    %cst_21 = arith.constant 1.280000e+02 : f32
    %33 = vector.broadcast %cst_21 : f32 to vector<8x128xf32>
    %34 = arith.select %31, %32, %33 : vector<8x128xi1>, vector<8x128xf32>
    %cst_22 = arith.constant dense<0x7F800000> : vector<8xf32>
    %35 = vector.multi_reduction <minimumf>, %34, %cst_22 [1] : vector<8x128xf32> to vector<8xf32>
    %36 = vector.shape_cast %35 : vector<8xf32> to vector<8x1xf32>
    %37 = arith.fptosi %36 : vector<8x1xf32> to vector<8x1xi32>
    %c0_23 = arith.constant 0 : index
    %c0_24 = arith.constant 0 : index
    %38 = vector.load %arg9[%c0_23, %c0_24] : memref<8x1xi32, #tpu.memory_space<vmem>>, vector<8x1xi32>
    tpu.vector_store %arg9[%c0_23, %c0_24], %37 {strides = array<i32>} : memref<8x1xi32, #tpu.memory_space<vmem>>, vector<8x1xi32>,
    return
  }
  func.func @transform_0(%arg0: i32) -> (i32, i32) {
    %c0_i32 = arith.constant 0 : i32
    %c0_i32_0 = arith.constant 0 : i32
    return %arg0, %c0_i32 : i32, i32
  }
  func.func @transform_1(%arg0: i32) -> (i32, i32) {
    %c0_i32 = arith.constant 0 : i32
    %c0_i32_0 = arith.constant 0 : i32
    %c0_i32_1 = arith.constant 0 : i32
    return %c0_i32, %c0_i32_0 : i32, i32
  }
  func.func @transform_2(%arg0: i32) -> (i32, i32) {
    %c0_i32 = arith.constant 0 : i32
    %c0_i32_0 = arith.constant 0 : i32
    %c0_i32_1 = arith.constant 0 : i32
    return %c0_i32, %c0_i32_0 : i32, i32
  }
  func.func @transform_3(%arg0: i32) -> (i32, i32) {
    %c0_i32 = arith.constant 0 : i32
    %c0_i32_0 = arith.constant 0 : i32
    %c0_i32_1 = arith.constant 0 : i32
    return %c0_i32, %c0_i32_0 : i32, i32
  }
  func.func @transform_4(%arg0: i32) -> (i32, i32) {
    %c0_i32 = arith.constant 0 : i32
    %c0_i32_0 = arith.constant 0 : i32
    %c0_i32_1 = arith.constant 0 : i32
    return %c0_i32, %c0_i32_0 : i32, i32
  }
  func.func @transform_5(%arg0: i32) -> (i32, i32) {
    %c0_i32 = arith.constant 0 : i32
    %c0_i32_0 = arith.constant 0 : i32
    %c0_i32_1 = arith.constant 0 : i32
    return %c0_i32, %c0_i32_0 : i32, i32
  }
  func.func @transform_6(%arg0: i32) -> (i32, i32) {
    %c0_i32 = arith.constant 0 : i32
    %c0_i32_0 = arith.constant 0 : i32
    %c0_i32_1 = arith.constant 0 : i32
    return %c0_i32, %c0_i32_0 : i32, i32
  }
  func.func @transform_7(%arg0: i32) -> (i32, i32) {
    %c0_i32 = arith.constant 0 : i32
    %c0_i32_0 = arith.constant 0 : i32
    return %arg0, %c0_i32 : i32, i32
  }
  func.func @transform_8(%arg0: i32) -> (i32, i32) {
    %c0_i32 = arith.constant 0 : i32
    %c0_i32_0 = arith.constant 0 : i32
    return %arg0, %c0_i32 : i32, i32
  }
}

</mosaic_0001>

<llo_original>
// kernel: qnet_forward.1
$region0: #{qnet_forward.1}
  #allocation0 [shape = 'u32[]', space=smem, size = 0x4, offset = 0x4, fixed_abs, tag = 'smem constant byte address 0x4 - core index']
  #allocation1 [shape = 'u32[144,128]{1,0:T(1,128)}', space=vmem, size = 0x12000, scoped, tag = 'internal scratch']
  %s0 = inlined_call_operand.vmem [shape: bf16[8,8], index: 0, kind: input, shape index: {}]
  %s1 = inlined_call_operand.vmem [shape: bf16[8,128], index: 1, kind: input, shape index: {}]
  %s2 = inlined_call_operand.vmem [shape: f32[1,128], index: 2, kind: input, shape index: {}]
  %s3 = inlined_call_operand.vmem [shape: bf16[128,64], index: 3, kind: input, shape index: {}]
  %s4 = inlined_call_operand.vmem [shape: f32[1,64], index: 4, kind: input, shape index: {}]
  %s5 = inlined_call_operand.vmem [shape: bf16[64,128], index: 5, kind: input, shape index: {}]
  %s6 = inlined_call_operand.vmem [shape: f32[1,128], index: 6, kind: input, shape index: {}]
  %s7 = inlined_call_operand.vmem [shape: f32[8,128], index: 7, kind: output, shape index: {0}]
  %s8 = inlined_call_operand.vmem [shape: s32[8,1], index: 8, kind: output, shape index: {1}]
  %9 = xla_tuple %s7, %s8
  %s10 = sld [smem:[#allocation0]]
  $region46: #{qnet_forward.1} parent=0
    _
  %s12 = ssub.s32 1, %s10
  %s13 = scalar_select 0, %s12, %s10
  // Predicated region
  $region2: #{qnet_forward.1} parent=0 // pred_check
    _
  $region3: #{qnet_forward.1} parent=0 // pred_check_branch
    %15 = sbr.rel (0) target = $region5
  $region4: #{qnet_forward.1} parent=0 // pred_region
    _
  $region5: #{qnet_forward.1} parent=0 // pred_fallthru
    _
  // Predicated region
  $region6: #{qnet_forward.1} parent=0 // pred_check
    _
  $region7: #{qnet_forward.1} parent=0 // pred_check_branch
    %17 = sbr.rel (0) target = $region9
  $region8: #{qnet_forward.1} parent=0 // pred_region
    _
  $region9: #{qnet_forward.1} parent=0 // pred_fallthru
    _
  // Predicated region
  $region10: #{qnet_forward.1} parent=0 // pred_check
    _
  $region11: #{qnet_forward.1} parent=0 // pred_check_branch
    %19 = sbr.rel (0) target = $region13
  $region12: #{qnet_forward.1} parent=0 // pred_region
    _
  $region13: #{qnet_forward.1} parent=0 // pred_fallthru
    _
  // Predicated region
  $region14: #{qnet_forward.1} parent=0 // pred_check
    _
  $region15: #{qnet_forward.1} parent=0 // pred_check_branch
    %21 = sbr.rel (0) target = $region17
  $region16: #{qnet_forward.1} parent=0 // pred_region
    _
  $region17: #{qnet_forward.1} parent=0 // pred_fallthru
    _
  // Predicated region
  $region18: #{qnet_forward.1} parent=0 // pred_check
    _
  $region19: #{qnet_forward.1} parent=0 // pred_check_branch
    %23 = sbr.rel (0) target = $region21
  $region20: #{qnet_forward.1} parent=0 // pred_region
    _
  $region21: #{qnet_forward.1} parent=0 // pred_fallthru
    _
  // Predicated region
  $region22: #{qnet_forward.1} parent=0 // pred_check
    _
  $region23: #{qnet_forward.1} parent=0 // pred_check_branch
    %25 = sbr.rel (0) target = $region25
  $region24: #{qnet_forward.1} parent=0 // pred_region
    _
  $region25: #{qnet_forward.1} parent=0 // pred_fallthru
    _
  // Predicated region
  $region26: #{qnet_forward.1} parent=0 // pred_check
    _
  $region27: #{qnet_forward.1} parent=0 // pred_check_branch
    %27 = sbr.rel (0) target = $region29
  $region28: #{qnet_forward.1} parent=0 // pred_region
    _
  $region29: #{qnet_forward.1} parent=0 // pred_fallthru
    _
  %v29 = vld [vmem:[%s0] sm:$0xf]
  %v30 = vld [vmem:[%s1] sm:$0xf]
  %v31 = vld [vmem:[%s2] sm:$0x1]
  %v33 = vlaneseq
  %v34 = vshrl.u32 %v33, 7
  %v35 = vsub.s32 0, %v34
  %v36 = vrot.slane %v31, %v35
  %vm38 = vcmask 64512
  %v40 = vsel %vm38, %v29, 0
  %vm42 = vcmask 1043456
  %v44 = vsel %vm42, %v30, 0
  %46 = vmatprep.subr.bf16.mxu0 0
  %47 = vmatpush1.bf16.msra.mxu0 0
  %48 = vmatprep.subr.bf16.mxu0 0
  %49 = vmatpush1.bf16.msra.mxu0 0
  %50 = vmatprep.subr.bf16.mxu0 0
  %51 = vmatpush1.bf16.msra.mxu0 0
  %52 = vmatprep.subr.bf16.mxu0 0
  %53 = vmatpush1.bf16.msra.mxu0 0
  %54 = vmatprep.subr.bf16.mxu0 0
  %55 = vmatpush1.bf16.msra.mxu0 0
  %56 = vmatprep.subr.bf16.mxu0 0
  %57 = vmatpush1.bf16.msra.mxu0 0
  %58 = vmatprep.subr.bf16.mxu0 0
  %59 = vmatpush1.bf16.msra.mxu0 0
  %60 = vmatprep.subr.bf16.mxu0 0
  %61 = vmatpush1.bf16.msra.mxu0 %v44
  %62 = vmatprep.subr.bf16.mxu0 0
  %63 = vmatpush2.bf16.msra.mxu0 0
  %64 = vmatprep.subr.bf16.mxu0 0
  %65 = vmatpush2.bf16.msra.mxu0 0
  %66 = vmatprep.subr.bf16.mxu0 0
  %67 = vmatpush2.bf16.msra.mxu0 0
  %68 = vmatprep.subr.bf16.mxu0 0
  %69 = vmatpush2.bf16.msra.mxu0 0
  %70 = vmatprep.subr.bf16.mxu0 0
  %71 = vmatpush2.bf16.msra.mxu0 0
  %72 = vmatprep.subr.bf16.mxu0 0
  %73 = vmatpush2.bf16.msra.mxu0 0
  %74 = vmatprep.subr.bf16.mxu0 0
  %75 = vmatpush2.bf16.msra.mxu0 0
  %76 = vmatprep.subr.bf16.mxu0 0
  %77 = vmatpush2.bf16.msra.mxu0 0
  %78 = vmatprep.mubr.bf16.mxu0 0
  %79 = vmatmul.mubr.bf16.gmra.mxu0 %v40
  %v80 = vpop.f32.mrf.mxu0
  %v81 = vadd.f32 %v36, %v80
  %v82 = vpop.f32.mrf.mxu0
  %v83 = vpop.f32.mrf.mxu0
  %v84 = vpop.f32.mrf.mxu0
  %85 = vdwg.mxu0
  %v86 = vmax.f32 %v81, 0.0
  %v87 = vpack.c.bf16 %v86, %v86
  %v88 = vld [vmem:[%s3] sm:$0xf]
  %v89 = vld [vmem:[%s3 + $0x4] sm:$0xf]
  %v90 = vld [vmem:[%s3 + $0x8] sm:$0xf]
  %v91 = vld [vmem:[%s3 + $0xc] sm:$0xf]
  %v92 = vld [vmem:[%s3 + $0x10] sm:$0xf]
  %v93 = vld [vmem:[%s3 + $0x14] sm:$0xf]
  %v94 = vld [vmem:[%s3 + $0x18] sm:$0xf]
  %v95 = vld [vmem:[%s3 + $0x1c] sm:$0xf]
  %v96 = vld [vmem:[%s3 + $0x20] sm:$0xf]
  %v97 = vld [vmem:[%s3 + $0x24] sm:$0xf]
  %v98 = vld [vmem:[%s3 + $0x28] sm:$0xf]
  %v99 = vld [vmem:[%s3 + $0x2c] sm:$0xf]
  %v100 = vld [vmem:[%s3 + $0x30] sm:$0xf]
  %v101 = vld [vmem:[%s3 + $0x34] sm:$0xf]
  %v102 = vld [vmem:[%s3 + $0x38] sm:$0xf]
  %v103 = vld [vmem:[%s3 + $0x3c] sm:$0xf]
  %v104 = vld [vmem:[%s4] sm:$0x1]
  %v106 = vlaneseq
  %v107 = vshrl.u32 %v106, 7
  %v108 = vsub.s32 0, %v107
  %v109 = vrot.slane %v104, %v108
  %v127 = vunpack.c.l.b16 %v88
  %v128 = vunpack.c.l.b16 %v89
  %v129 = vunpack.c.l.b16 %v90
  %v130 = vunpack.c.l.b16 %v91
  %v131 = vunpack.c.l.b16 %v92
  %v132 = vunpack.c.l.b16 %v93
  %v133 = vunpack.c.l.b16 %v94
  %v134 = vunpack.c.l.b16 %v95
  %v135 = vunpack.c.l.b16 %v96
  %v136 = vunpack.c.l.b16 %v97
  %v137 = vunpack.c.l.b16 %v98
  %v138 = vunpack.c.l.b16 %v99
  %v139 = vunpack.c.l.b16 %v100
  %v140 = vunpack.c.l.b16 %v101
  %v141 = vunpack.c.l.b16 %v102
  %v142 = vunpack.c.l.b16 %v103
  %v143 = vpack.c.b16 %v128, %v127
  %v144 = vpack.c.b16 %v130, %v129
  %v145 = vpack.c.b16 %v132, %v131
  %v146 = vpack.c.b16 %v134, %v133
  %v147 = vpack.c.b16 %v136, %v135
  %v148 = vpack.c.b16 %v138, %v137
  %v149 = vpack.c.b16 %v140, %v139
  %v150 = vpack.c.b16 %v142, %v141
  %159 = vmatprep.subr.bf16.mxu0 0
  %160 = vmatpush1.bf16.msra.mxu0 %v150
  %161 = vmatprep.subr.bf16.mxu0 0
  %162 = vmatpush1.bf16.msra.mxu0 %v149
  %163 = vmatprep.subr.bf16.mxu0 0
  %164 = vmatpush1.bf16.msra.mxu0 %v148
  %165 = vmatprep.subr.bf16.mxu0 0
  %166 = vmatpush1.bf16.msra.mxu0 %v147
  %167 = vmatprep.subr.bf16.mxu0 0
  %168 = vmatpush1.bf16.msra.mxu0 %v146
  %169 = vmatprep.subr.bf16.mxu0 0
  %170 = vmatpush1.bf16.msra.mxu0 %v145
  %171 = vmatprep.subr.bf16.mxu0 0
  %172 = vmatpush1.bf16.msra.mxu0 %v144
  %173 = vmatprep.subr.bf16.mxu0 0
  %174 = vmatpush1.bf16.msra.mxu0 %v143
  %175 = vmatprep.subr.bf16.mxu0 0
  %176 = vmatpush2.bf16.msra.mxu0 0
  %177 = vmatprep.subr.bf16.mxu0 0
  %178 = vmatpush2.bf16.msra.mxu0 0
  %179 = vmatprep.subr.bf16.mxu0 0
  %180 = vmatpush2.bf16.msra.mxu0 0
  %181 = vmatprep.subr.bf16.mxu0 0
  %182 = vmatpush2.bf16.msra.mxu0 0
  %183 = vmatprep.subr.bf16.mxu0 0
  %184 = vmatpush2.bf16.msra.mxu0 0
  %185 = vmatprep.subr.bf16.mxu0 0
  %186 = vmatpush2.bf16.msra.mxu0 0
  %187 = vmatprep.subr.bf16.mxu0 0
  %188 = vmatpush2.bf16.msra.mxu0 0
  %189 = vmatprep.subr.bf16.mxu0 0
  %190 = vmatpush2.bf16.msra.mxu0 0
  %191 = vmatprep.mubr.bf16.mxu0 0
  %192 = vmatmul.mubr.bf16.gmra.mxu0 %v87
  %v193 = vpop.f32.mrf.mxu0
  %v194 = vadd.f32 %v109, %v193
  %v195 = vpop.f32.mrf.mxu0
  %v196 = vpop.f32.mrf.mxu0
  %v197 = vpop.f32.mrf.mxu0
  %198 = vdwg.mxu0
  %v199 = vmax.f32 %v194, 0.0
  %v200 = vpack.c.bf16 %v199, %v199
  %v201 = vld [vmem:[%s5] sm:$0xf]
  %v202 = vld [vmem:[%s5 + $0x4] sm:$0xf]
  %v203 = vld [vmem:[%s5 + $0x8] sm:$0xf]
  %v204 = vld [vmem:[%s5 + $0xc] sm:$0xf]
  %v205 = vld [vmem:[%s5 + $0x10] sm:$0xf]
  %v206 = vld [vmem:[%s5 + $0x14] sm:$0xf]
  %v207 = vld [vmem:[%s5 + $0x18] sm:$0xf]
  %v208 = vld [vmem:[%s5 + $0x1c] sm:$0xf]
  %v209 = vld [vmem:[%s6] sm:$0x1]
  %v211 = vlaneseq
  %v212 = vshrl.u32 %v211, 7
  %v213 = vsub.s32 0, %v212
  %v214 = vrot.slane %v209, %v213
  %v224 = vunpack.c.l.b16 %v201
  %v225 = vunpack.c.l.b16 %v202
  %v226 = vunpack.c.l.b16 %v203
  %v227 = vunpack.c.l.b16 %v204
  %v228 = vunpack.c.l.b16 %v205
  %v229 = vunpack.c.l.b16 %v206
  %v230 = vunpack.c.l.b16 %v207
  %v231 = vunpack.c.l.b16 %v208
  %v232 = vpack.c.b16 %v225, %v224
  %v233 = vpack.c.b16 %v227, %v226
  %v234 = vpack.c.b16 %v229, %v228
  %v235 = vpack.c.b16 %v231, %v230
  %vm240 = vcmask 523264
  %v242 = vsel %vm240, %v200, 0
  %244 = vmatprep.subr.bf16.mxu0 0
  %245 = vmatpush1.bf16.msra.mxu0 0
  %246 = vmatprep.subr.bf16.mxu0 0
  %247 = vmatpush1.bf16.msra.mxu0 0
  %248 = vmatprep.subr.bf16.mxu0 0
  %249 = vmatpush1.bf16.msra.mxu0 0
  %250 = vmatprep.subr.bf16.mxu0 0
  %251 = vmatpush1.bf16.msra.mxu0 0
  %252 = vmatprep.subr.bf16.mxu0 0
  %253 = vmatpush1.bf16.msra.mxu0 %v235
  %254 = vmatprep.subr.bf16.mxu0 0
  %255 = vmatpush1.bf16.msra.mxu0 %v234
  %256 = vmatprep.subr.bf16.mxu0 0
  %257 = vmatpush1.bf16.msra.mxu0 %v233
  %258 = vmatprep.subr.bf16.mxu0 0
  %259 = vmatpush1.bf16.msra.mxu0 %v232
  %260 = vmatprep.subr.bf16.mxu0 0
  %261 = vmatpush2.bf16.msra.mxu0 0
  %262 = vmatprep.subr.bf16.mxu0 0
  %263 = vmatpush2.bf16.msra.mxu0 0
  %264 = vmatprep.subr.bf16.mxu0 0
  %265 = vmatpush2.bf16.msra.mxu0 0
  %266 = vmatprep.subr.bf16.mxu0 0
  %267 = vmatpush2.bf16.msra.mxu0 0
  %268 = vmatprep.subr.bf16.mxu0 0
  %269 = vmatpush2.bf16.msra.mxu0 0
  %270 = vmatprep.subr.bf16.mxu0 0
  %271 = vmatpush2.bf16.msra.mxu0 0
  %272 = vmatprep.subr.bf16.mxu0 0
  %273 = vmatpush2.bf16.msra.mxu0 0
  %274 = vmatprep.subr.bf16.mxu0 0
  %275 = vmatpush2.bf16.msra.mxu0 0
  %276 = vmatprep.mubr.bf16.mxu0 0
  %277 = vmatmul.mubr.bf16.gmra.mxu0 %v242
  %v278 = vpop.f32.mrf.mxu0
  %v279 = vadd.f32 %v214, %v278
  %v280 = vpop.f32.mrf.mxu0
  %v281 = vpop.f32.mrf.mxu0
  %v282 = vpop.f32.mrf.mxu0
  %283 = vdwg.mxu0
  %284 = vst [vmem:[%s7] sm:$0xff] %v279
  %v285 = vlaneseq
  %v286 = vand.u32 %v285, 127
  %vm287 = vcmp.lt.s32.totalorder %v286, 2
  %v288 = vsel %vm287, %v279, -3.4028235e+38
  %289 = vmax.xlane.f32.xlu0 %v288
  %v290 = vpop.xlane.xlu0 %289
  %vm291 = vcmp.eq.f32.partialorder %v288, %v290
  %v292 = vcvt.s32.f32 %v286
  %v293 = vsel %vm291, %v292, 128.0
  %294 = vmin.xlane.f32.xlu0 %v293
  %v295 = vpop.xlane.xlu0 %294
  %v296 = vcvt.f32.s32.to.zero.pseudo %v295
  %vm297 = vcmask 7168
  %298 = vst.msk [vmem:[%s8] sm:$0xff] %vm297, %v296
  // Predicated region
  $region30: #{qnet_forward.1} parent=0 // pred_check
    _
  $region31: #{qnet_forward.1} parent=0 // pred_check_branch
    %300 = sbr.rel (0) target = $region33
  $region32: #{qnet_forward.1} parent=0 // pred_region
    _
  $region33: #{qnet_forward.1} parent=0 // pred_fallthru
    _
  // Predicated region
  $region34: #{qnet_forward.1} parent=0 // pred_check
    _
  $region35: #{qnet_forward.1} parent=0 // pred_check_branch
    %302 = sbr.rel (0) target = $region37
  $region36: #{qnet_forward.1} parent=0 // pred_region
    _
  $region37: #{qnet_forward.1} parent=0 // pred_fallthru
    _
  // Predicated region
  $region38: #{qnet_forward.1} parent=0 // pred_check
    _
  $region39: #{qnet_forward.1} parent=0 // pred_check_branch
    %304 = sbr.rel (0) target = $region41
  $region40: #{qnet_forward.1} parent=0 // pred_region
    _
  $region41: #{qnet_forward.1} parent=0 // pred_fallthru
    _
  // Predicated region
  $region42: #{qnet_forward.1} parent=0 // pred_check
    _
  $region43: #{qnet_forward.1} parent=0 // pred_check_branch
    %306 = sbr.rel (0) target = $region45
  $region44: #{qnet_forward.1} parent=0 // pred_region
    _
  $region45: #{qnet_forward.1} parent=0 // pred_fallthru
    _

</llo_original>
